<compile_context>
chip_gen: v6e
topology: v6e:2x2x1
jax: 0.10.0
libtpu: 0.0.40
codegen_flags: <defaults>
</compile_context>

<pallas_src>
import functools

import numpy as np
import jax
import jax.numpy as jnp
from jax import lax
from jax.experimental import pallas as pl
from jax.experimental.pallas import tpu as pltpu


def _round_up(n, m):
    return ((n + m - 1) // m) * m


def _encoder_kernel(x_ref, w1_ref, b1_ref, w2_ref, b2_ref,
                    gamma_ref, beta_ref, w3_ref, b3_ref, o_ref,
                    *, h1_real, h1_pad):
    """One row-tile: relu(x@W1+b1) @ W2 + b2 -> LayerNorm -> relu -> @W3 + b3."""
    # In-kernel f32 -> bf16 cast (VPU work hidden under DMA/MXU slack).
    x = x_ref[...].astype(jnp.bfloat16)                         # (tm, d_in)

    # Linear(D_in -> H0) + ReLU   (bf16 MXU operands, f32 accumulation)
    h = jnp.dot(x, w1_ref[...], preferred_element_type=jnp.float32) + b1_ref[...]
    h = jnp.maximum(h, 0.0)

    # Linear(H0 -> H1).  Padded H1 lanes come out exactly 0 (zero W2 cols, zero b2).
    h = jnp.dot(h.astype(jnp.bfloat16), w2_ref[...],
                preferred_element_type=jnp.float32) + b2_ref[...]

    # Two-pass LayerNorm over the *real* H1 features (matches PyTorch; avoids the
    # E[x^2] - mean^2 cancellation of the single-pass form).
    inv_n = jnp.float32(1.0 / h1_real)
    mean = jnp.sum(h, axis=-1, keepdims=True) * inv_n           # padded lanes are 0
    c = h - mean
    if h1_pad != h1_real:
        lane = lax.broadcasted_iota(jnp.int32, (1, h1_pad), 1)
        c = jnp.where(lane < h1_real, c, 0.0)                   # keep pad out of var
    var = jnp.sum(c * c, axis=-1, keepdims=True) * inv_n
    h = c * lax.rsqrt(var + 1e-5)
    h = h * gamma_ref[...] + beta_ref[...]                      # padded gamma/beta = 0
    h = jnp.maximum(h, 0.0)

    # Linear(H1 -> D_out), unpadded lane-narrow output (padded W3 rows are zero).
    o = jnp.dot(h.astype(jnp.bfloat16), w3_ref[...],
                preferred_element_type=jnp.float32) + b3_ref[...]
    o_ref[...] = o.astype(o_ref.dtype)


def cubes_encoder_forward(x, params, output_shape):
    """x: (B, K, *spatial) float32 -> (B, K, *output_shape) (or (B, K, D_out) if int)."""
    B, K = x.shape[0], x.shape[1]
    d_in = int(np.prod(x.shape[2:]))
    M = B * K

    w1, b1, w2, b2, gamma, beta, w3, b3 = params
    h0, h1, d_out = w1.shape[1], w2.shape[1], w3.shape[1]

    # Hidden dims padded to full 128 lanes (tiny resident weights); the OUTPUT
    # dim is left unpadded so HBM writeback is only M * d_out elements.
    h0_p = _round_up(h0, 128)
    h1_p = _round_up(h1, 128)

    # ---- adaptive row tile ---------------------------------------------------
    row_bytes = (d_in + d_out) * 4                    # streamed f32 bytes per row
    tm = _round_up(max((3 * 2**20) // max(row_bytes, 1), 256), 128)   # ~3 MiB/step
    min_steps = 8                                     # >= 4 steps per v7x TensorCore
    tm = min(tm, _round_up(max(pl.cdiv(M, min_steps), 1), 8))
    tm = min(tm, _round_up(M, 8))
    tm = max(8, (tm // 8) * 8)

    # ---- generation-aware VMEM budget ---------------------------------------
    try:
        phys_vmem = int(pltpu.get_tpu_info().vmem_capacity_bytes)
    except Exception:
        phys_vmem = 64 * 2**20                        # v7x per-core floor, safe everywhere
    budget = min(int(0.8 * phys_vmem), 100 * 2**20)

    def est_vmem(tm_):
        return (2 * tm_ * d_in * 4                                   # x tiles (f32, 2x buf)
                + 2 * tm_ * d_out * 4                                # out tiles (f32, 2x buf)
                + (d_in * h0_p + h0_p * h1_p + h1_p * d_out) * 2     # resident bf16 weights
                + (h0_p + 3 * h1_p + d_out) * 4                      # biases / gamma / beta
                + tm_ * (d_in + h0_p + h1_p) * 2                     # in-kernel bf16 copies
                + tm_ * (h0_p + 2 * h1_p + d_out) * 4)               # f32 intermediates

    while tm > 128 and est_vmem(tm) > budget:
        tm = max(128, ((tm // 2) // 8) * 8)

    steps = pl.cdiv(M, tm)
    vmem_limit = int(min(budget, max(int(est_vmem(tm) * 1.25), 8 * 2**20)))

    # ---- operands (x stays f32; weights bf16; bias / LN params f32) ----------
    x2d = x.reshape(M, d_in)                          # free reshape, no cast, no pad

    def pad2(a, rows, cols):
        return jnp.pad(a, ((0, rows - a.shape[0]), (0, cols - a.shape[1])))

    w1_p = pad2(w1.astype(jnp.bfloat16), d_in, h0_p)
    b1_p = pad2(b1.astype(jnp.float32), 1, h0_p)
    w2_p = pad2(w2.astype(jnp.bfloat16), h0_p, h1_p)
    b2_p = pad2(b2.astype(jnp.float32), 1, h1_p)
    g_p = pad2(gamma.astype(jnp.float32), 1, h1_p)
    be_p = pad2(beta.astype(jnp.float32), 1, h1_p)
    w3_p = pad2(w3.astype(jnp.bfloat16), h1_p, d_out)   # output dim NOT padded
    b3_p = b3.astype(jnp.float32)

    # Grid-invariant params: single whole-array VMEM residency (no double-buffering).
    resident = pl.BlockSpec(memory_space=pltpu.MemorySpace.VMEM)

    kernel = functools.partial(_encoder_kernel, h1_real=h1, h1_pad=h1_p)

    out2d = pl.pallas_call(
        kernel,
        out_shape=jax.ShapeDtypeStruct((M, d_out), jnp.float32),
        grid_spec=pltpu.PrefetchScalarGridSpec(
            num_scalar_prefetch=0,
            grid=(steps,),
            in_specs=[
                pl.BlockSpec((tm, d_in), lambda i: (i, 0)),   # streamed f32 row tiles
                resident, resident,                           # W1, b1
                resident, resident,                           # W2, b2
                resident, resident,                           # gamma, beta
                resident, resident,                           # W3, b3
            ],
            out_specs=pl.BlockSpec((tm, d_out), lambda i: (i, 0)),   # unpadded output
        ),
        compiler_params=pltpu.CompilerParams(
            dimension_semantics=("parallel",),
            vmem_limit_bytes=vmem_limit),
    )(x2d, w1_p, b1_p, w2_p, b2_p, g_p, be_p, w3_p, b3_p)

    if isinstance(output_shape, int):
        return out2d.reshape(B, K, output_shape)      # nn.Identity tail
    return out2d.reshape(B, K, *output_shape)         # nn.Unflatten(-1, output_shape)


def init_params(key, d_in, hidden_dim, d_out):
    """Deterministic synthetic params (PyTorch-style uniform fan-in init)."""
    h0, h1 = hidden_dim
    ks = jax.random.split(key, 6)

    def lin(kw, kb, fan_in, fan_out):
        bound = 1.0 / np.sqrt(fan_in)
        w = jax.random.uniform(kw, (fan_in, fan_out), jnp.float32, -bound, bound)
        b = jax.random.uniform(kb, (1, fan_out), jnp.float32, -bound, bound)
        return w, b

    w1, b1 = lin(ks[0], ks[1], d_in, h0)
    w2, b2 = lin(ks[2], ks[3], h0, h1)
    w3, b3 = lin(ks[4], ks[5], h1, d_out)
    gamma = jnp.ones((1, h1), jnp.float32)   # LayerNorm weight
    beta = jnp.zeros((1, h1), jnp.float32)   # LayerNorm bias
    return (w1, b1, w2, b2, gamma, beta, w3, b3)


def _reference_forward(x, params, output_shape, *, matmul_dtype=jnp.float32):
    """Pure-JAX reference mirroring the PyTorch module.

    matmul_dtype=bfloat16 mimics the kernel's MXU operand precision for a tight check.
    """
    w1, b1, w2, b2, gamma, beta, w3, b3 = params
    B, K = x.shape[0], x.shape[1]

    def mm(a, w):
        return jnp.dot(a.astype(matmul_dtype), w.astype(matmul_dtype),
                       preferred_element_type=jnp.float32)

    h = x.reshape(B, K, -1)
    h = jnp.maximum(mm(h, w1) + b1, 0.0)
    h = mm(h, w2) + b2
    mean = h.mean(-1, keepdims=True)
    var = ((h - mean) ** 2).mean(-1, keepdims=True)
    h = (h - mean) / jnp.sqrt(var + 1e-5) * gamma + beta
    h = jnp.maximum(h, 0.0)
    o = mm(h, w3) + b3
    if isinstance(output_shape, int):
        return o
    return o.reshape(B, K, *output_shape)


if __name__ == "__main__":
    # Small shapes consistent with the module:
    #   input_shape = (num_objects, H, W) = (4, 16, 16)  -> D_in = 256
    #   hidden_dim  = [32, 32]
    #   output_shape = 8 (int -> nn.Identity tail)
    B, K, H, W = 2, 4, 16, 16
    hidden_dim = [32, 32]
    output_shape = 8
    d_in = H * W

    key = jax.random.PRNGKey(0)
    kx, kp = jax.random.split(key)
    x = jax.random.normal(kx, (B, K, H, W), jnp.float32)
    params = init_params(kp, d_in, hidden_dim, output_shape)

    out = cubes_encoder_forward(x, params, output_shape)
    out = jax.block_until_ready(out)
    assert out.shape == (B, K, output_shape), out.shape

    # Tight check vs a reference that uses the same bf16 MXU operand precision.
    ref_bf16 = _reference_forward(x, params, output_shape, matmul_dtype=jnp.bfloat16)
    np.testing.assert_allclose(np.asarray(out), np.asarray(ref_bf16),
                               rtol=2e-3, atol=2e-3)

    # Loose sanity check vs the full-f32 reference (kernel uses bf16 matmul operands).
    ref_f32 = _reference_forward(x, params, output_shape)
    np.testing.assert_allclose(np.asarray(out), np.asarray(ref_f32),
                               rtol=5e-2, atol=5e-2)

    print("KERNEL_OK")
</pallas_src>

<mosaic_0001>
module attributes {stable_mosaic.version = 11 : i64} {
  func.func @_encoder_kernel(%arg0: i32, %arg1: memref<8x256xf32, #tpu.memory_space<vmem>>, %arg2: memref<256x128xbf16, #tpu.memory_space<vmem>>, %arg3: memref<1x128xf32, #tpu.memory_space<vmem>>, %arg4: memref<128x128xbf16, #tpu.memory_space<vmem>>, %arg5: memref<1x128xf32, #tpu.memory_space<vmem>>, %arg6: memref<1x128xf32, #tpu.memory_space<vmem>>, %arg7: memref<1x128xf32, #tpu.memory_space<vmem>>, %arg8: memref<128x8xbf16, #tpu.memory_space<vmem>>, %arg9: memref<1x8xf32, #tpu.memory_space<vmem>>, %arg10: memref<8x8xf32, #tpu.memory_space<vmem>>) attributes {dimension_semantics = [#tpu.dimension_semantics<parallel>], iteration_bounds = array<i64: 1>, scalar_prefetch = 0 : i64, scratch_operands = 0 : i64, tpu.core_type = #tpu.core_type<tc>, window_params = [{transform_indices = @transform_0, window_bounds = array<i64: 8, 256>}, {pipeline_mode = #tpu.pipeline_mode<synchronous>, transform_indices = @transform_1, window_bounds = array<i64: 256, 128>}, {pipeline_mode = #tpu.pipeline_mode<synchronous>, transform_indices = @transform_2, window_bounds = array<i64: 1, 128>}, {pipeline_mode = #tpu.pipeline_mode<synchronous>, transform_indices = @transform_3, window_bounds = array<i64: 128, 128>}, {pipeline_mode = #tpu.pipeline_mode<synchronous>, transform_indices = @transform_4, window_bounds = array<i64: 1, 128>}, {pipeline_mode = #tpu.pipeline_mode<synchronous>, transform_indices = @transform_5, window_bounds = array<i64: 1, 128>}, {pipeline_mode = #tpu.pipeline_mode<synchronous>, transform_indices = @transform_6, window_bounds = array<i64: 1, 128>}, {pipeline_mode = #tpu.pipeline_mode<synchronous>, transform_indices = @transform_7, window_bounds = array<i64: 128, 8>}, {pipeline_mode = #tpu.pipeline_mode<synchronous>, transform_indices = @transform_8, window_bounds = array<i64: 1, 8>}, {transform_indices = @transform_9, window_bounds = array<i64: 8, 8>}]} {
    %c0 = arith.constant 0 : index
    %c0_0 = arith.constant 0 : index
    %0 = vector.load %arg1[%c0, %c0_0] : memref<8x256xf32, #tpu.memory_space<vmem>>, vector<8x256xf32>
    %1 = arith.truncf %0 : vector<8x256xf32> to vector<8x256xbf16>
    %c0_1 = arith.constant 0 : index
    %c0_2 = arith.constant 0 : index
    %2 = vector.load %arg2[%c0_1, %c0_2] : memref<256x128xbf16, #tpu.memory_space<vmem>>, vector<256x128xbf16>
    %cst = arith.constant dense<0.000000e+00> : vector<8x128xf32>
    %3 = tpu.matmul %1, %2, %cst {dimension_numbers = #tpu.dot_dimension_numbers<[1], [0], [0], [1], [0, 0, 1, 1], [], []>} : vector<8x256xbf16>, vector<256x128xbf16>, vector<8x128xf32> -> vector<8x128xf32>
    %c0_3 = arith.constant 0 : index
    %c0_4 = arith.constant 0 : index
    %4 = vector.load %arg3[%c0_3, %c0_4] : memref<1x128xf32, #tpu.memory_space<vmem>>, vector<1x128xf32>
    %5 = vector.broadcast %4 : vector<1x128xf32> to vector<8x128xf32>
    %6 = arith.addf %3, %5 : vector<8x128xf32>
    %cst_5 = arith.constant 0.000000e+00 : f32
    %7 = vector.broadcast %cst_5 : f32 to vector<8x128xf32>
    %8 = arith.maximumf %6, %7 : vector<8x128xf32>
    %9 = arith.truncf %8 : vector<8x128xf32> to vector<8x128xbf16>
    %c0_6 = arith.constant 0 : index
    %c0_7 = arith.constant 0 : index
    %10 = vector.load %arg4[%c0_6, %c0_7] : memref<128x128xbf16, #tpu.memory_space<vmem>>, vector<128x128xbf16>
    %cst_8 = arith.constant dense<0.000000e+00> : vector<8x128xf32>
    %11 = tpu.matmul %9, %10, %cst_8 {dimension_numbers = #tpu.dot_dimension_numbers<[1], [0], [0], [1], [0, 0, 1, 1], [], []>} : vector<8x128xbf16>, vector<128x128xbf16>, vector<8x128xf32> -> vector<8x128xf32>
    %c0_9 = arith.constant 0 : index
    %c0_10 = arith.constant 0 : index
    %12 = vector.load %arg5[%c0_9, %c0_10] : memref<1x128xf32, #tpu.memory_space<vmem>>, vector<1x128xf32>
    %13 = vector.broadcast %12 : vector<1x128xf32> to vector<8x128xf32>
    %14 = arith.addf %11, %13 : vector<8x128xf32>
    %cst_11 = arith.constant dense<0.000000e+00> : vector<8xf32>
    %15 = vector.multi_reduction <add>, %14, %cst_11 [1] : vector<8x128xf32> to vector<8xf32>
    %16 = vector.shape_cast %15 : vector<8xf32> to vector<8x1xf32>
    %cst_12 = arith.constant 3.125000e-02 : f32
    %17 = vector.broadcast %cst_12 : f32 to vector<8x1xf32>
    %18 = arith.mulf %16, %17 : vector<8x1xf32>
    %19 = vector.broadcast %18 : vector<8x1xf32> to vector<8x128xf32>
    %20 = arith.subf %14, %19 : vector<8x128xf32>
    %21 = tpu.iota {dimensions = array<i32: 1>} : vector<1x128xi32>
    %c32_i32 = arith.constant 32 : i32
    %22 = vector.broadcast %c32_i32 : i32 to vector<1x128xi32>
    %23 = arith.cmpi slt, %21, %22 : vector<1x128xi32>
    %cst_13 = arith.constant 0.000000e+00 : f32
    %24 = vector.shape_cast %23 : vector<1x128xi1> to vector<1x128xi1>
    %25 = vector.broadcast %24 : vector<1x128xi1> to vector<8x128xi1>
    %26 = vector.broadcast %cst_13 : f32 to vector<8x128xf32>
    %27 = arith.select %25, %20, %26 : vector<8x128xi1>, vector<8x128xf32>
    %28 = arith.mulf %27, %27 : vector<8x128xf32>
    %cst_14 = arith.constant dense<0.000000e+00> : vector<8xf32>
    %29 = vector.multi_reduction <add>, %28, %cst_14 [1] : vector<8x128xf32> to vector<8xf32>
    %30 = vector.shape_cast %29 : vector<8xf32> to vector<8x1xf32>
    %cst_15 = arith.constant 3.125000e-02 : f32
    %31 = vector.broadcast %cst_15 : f32 to vector<8x1xf32>
    %32 = arith.mulf %30, %31 : vector<8x1xf32>
    %cst_16 = arith.constant 9.99999974E-6 : f32
    %33 = vector.broadcast %cst_16 : f32 to vector<8x1xf32>
    %34 = arith.addf %32, %33 : vector<8x1xf32>
    %35 = math.rsqrt %34 : vector<8x1xf32>
    %36 = vector.broadcast %35 : vector<8x1xf32> to vector<8x128xf32>
    %37 = arith.mulf %27, %36 : vector<8x128xf32>
    %c0_17 = arith.constant 0 : index
    %c0_18 = arith.constant 0 : index
    %38 = vector.load %arg6[%c0_17, %c0_18] : memref<1x128xf32, #tpu.memory_space<vmem>>, vector<1x128xf32>
    %39 = vector.broadcast %38 : vector<1x128xf32> to vector<8x128xf32>
    %40 = arith.mulf %37, %39 : vector<8x128xf32>
    %c0_19 = arith.constant 0 : index
    %c0_20 = arith.constant 0 : index
    %41 = vector.load %arg7[%c0_19, %c0_20] : memref<1x128xf32, #tpu.memory_space<vmem>>, vector<1x128xf32>
    %42 = vector.broadcast %41 : vector<1x128xf32> to vector<8x128xf32>
    %43 = arith.addf %40, %42 : vector<8x128xf32>
    %cst_21 = arith.constant 0.000000e+00 : f32
    %44 = vector.broadcast %cst_21 : f32 to vector<8x128xf32>
    %45 = arith.maximumf %43, %44 : vector<8x128xf32>
    %46 = arith.truncf %45 : vector<8x128xf32> to vector<8x128xbf16>
    %c0_22 = arith.constant 0 : index
    %c0_23 = arith.constant 0 : index
    %47 = vector.load %arg8[%c0_22, %c0_23] : memref<128x8xbf16, #tpu.memory_space<vmem>>, vector<128x8xbf16>
    %cst_24 = arith.constant dense<0.000000e+00> : vector<8x8xf32>
    %48 = tpu.matmul %46, %47, %cst_24 {dimension_numbers = #tpu.dot_dimension_numbers<[1], [0], [0], [1], [0, 0, 1, 1], [], []>} : vector<8x128xbf16>, vector<128x8xbf16>, vector<8x8xf32> -> vector<8x8xf32>
    %c0_25 = arith.constant 0 : index
    %c0_26 = arith.constant 0 : index
    %49 = vector.load %arg9[%c0_25, %c0_26] : memref<1x8xf32, #tpu.memory_space<vmem>>, vector<1x8xf32>
    %50 = vector.broadcast %49 : vector<1x8xf32> to vector<8x8xf32>
    %51 = arith.addf %48, %50 : vector<8x8xf32>
    %c0_27 = arith.constant 0 : index
    %c0_28 = arith.constant 0 : index
    %52 = vector.load %arg10[%c0_27, %c0_28] : memref<8x8xf32, #tpu.memory_space<vmem>>, vector<8x8xf32>
    tpu.vector_store %arg10[%c0_27, %c0_28], %51 {strides = array<i32>} : memref<8x8xf32, #tpu.memory_space<vmem>>, vector<8x8xf32>,
    return
  }
  func.func @transform_0(%arg0: i32) -> (i32, i32) {
    %c0_i32 = arith.constant 0 : i32
    %c0_i32_0 = arith.constant 0 : i32
    return %arg0, %c0_i32 : i32, i32
  }
  func.func @transform_1(%arg0: i32) -> (i32, i32) {
    %c0_i32 = arith.constant 0 : i32
    %c0_i32_0 = arith.constant 0 : i32
    %c0_i32_1 = arith.constant 0 : i32
    return %c0_i32, %c0_i32_0 : i32, i32
  }
  func.func @transform_2(%arg0: i32) -> (i32, i32) {
    %c0_i32 = arith.constant 0 : i32
    %c0_i32_0 = arith.constant 0 : i32
    %c0_i32_1 = arith.constant 0 : i32
    return %c0_i32, %c0_i32_0 : i32, i32
  }
  func.func @transform_3(%arg0: i32) -> (i32, i32) {
    %c0_i32 = arith.constant 0 : i32
    %c0_i32_0 = arith.constant 0 : i32
    %c0_i32_1 = arith.constant 0 : i32
    return %c0_i32, %c0_i32_0 : i32, i32
  }
  func.func @transform_4(%arg0: i32) -> (i32, i32) {
    %c0_i32 = arith.constant 0 : i32
    %c0_i32_0 = arith.constant 0 : i32
    %c0_i32_1 = arith.constant 0 : i32
    return %c0_i32, %c0_i32_0 : i32, i32
  }
  func.func @transform_5(%arg0: i32) -> (i32, i32) {
    %c0_i32 = arith.constant 0 : i32
    %c0_i32_0 = arith.constant 0 : i32
    %c0_i32_1 = arith.constant 0 : i32
    return %c0_i32, %c0_i32_0 : i32, i32
  }
  func.func @transform_6(%arg0: i32) -> (i32, i32) {
    %c0_i32 = arith.constant 0 : i32
    %c0_i32_0 = arith.constant 0 : i32
    %c0_i32_1 = arith.constant 0 : i32
    return %c0_i32, %c0_i32_0 : i32, i32
  }
  func.func @transform_7(%arg0: i32) -> (i32, i32) {
    %c0_i32 = arith.constant 0 : i32
    %c0_i32_0 = arith.constant 0 : i32
    %c0_i32_1 = arith.constant 0 : i32
    return %c0_i32, %c0_i32_0 : i32, i32
  }
  func.func @transform_8(%arg0: i32) -> (i32, i32) {
    %c0_i32 = arith.constant 0 : i32
    %c0_i32_0 = arith.constant 0 : i32
    %c0_i32_1 = arith.constant 0 : i32
    return %c0_i32, %c0_i32_0 : i32, i32
  }
  func.func @transform_9(%arg0: i32) -> (i32, i32) {
    %c0_i32 = arith.constant 0 : i32
    %c0_i32_0 = arith.constant 0 : i32
    return %arg0, %c0_i32 : i32, i32
  }
}

</mosaic_0001>

<llo_original>
// kernel: tpu_custom_call.1
$region0: #{tpu_custom_call.1}
  #allocation0 [shape = 'u32[]', space=smem, size = 0x4, offset = 0x4, fixed_abs, tag = 'smem constant byte address 0x4 - core index']
  #allocation1 [shape = 'u32[144,128]{1,0:T(1,128)}', space=vmem, size = 0x12000, scoped, tag = 'internal scratch']
  %s0 = inlined_call_operand.hbm [shape: f32[8,256], index: 0, kind: input, shape index: {}]
  %s1 = inlined_call_operand.hbm [shape: bf16[256,128], index: 1, kind: input, shape index: {}]
  %s2 = inlined_call_operand.vmem [shape: f32[1,128], index: 2, kind: input, shape index: {}]
  %s3 = inlined_call_operand.vmem [shape: bf16[128,128], index: 3, kind: input, shape index: {}]
  %s4 = inlined_call_operand.vmem [shape: f32[1,128], index: 4, kind: input, shape index: {}]
  %s5 = inlined_call_operand.vmem [shape: f32[1,128], index: 5, kind: input, shape index: {}]
  %s6 = inlined_call_operand.vmem [shape: f32[1,128], index: 6, kind: input, shape index: {}]
  %s7 = inlined_call_operand.vmem [shape: bf16[128,8], index: 7, kind: input, shape index: {}]
  %s8 = inlined_call_operand.vmem [shape: f32[1,8], index: 8, kind: input, shape index: {}]
  %s9 = inlined_call_operand.hbm [shape: f32[8,8], index: 9, kind: output, shape index: {}]
  %s10 = sld [smem:[#allocation0]]
  $region54: #{tpu_custom_call.1} parent=0
    _
  %s12 = ssub.s32 1, %s10
  %s13 = scalar_select 0, %s12, %s10
  $region1: #{tpu_custom_call.1} parent=0
    #allocation2 [shape = 'u8[8192]{0}', space=vmem, size = 0x2000, scoped, tag = 'input window, operand 0, single buffered']
    #allocation3 [shape = 's32[1]{0}', space=sflag, size = 0x4, scoped, tag = 'scoped memory for tpu_custom_call.1']
    #allocation4 [shape = 's32[1]{0}', space=sflag, size = 0x4, scoped, tag = 'scoped memory for tpu_custom_call.1']
    #allocation5 [shape = 'u8[65536]{0}', space=vmem, size = 0x10000, scoped, tag = 'input window, operand 1, single buffered']
    #allocation6 [shape = 's32[1]{0}', space=sflag, size = 0x4, scoped, tag = 'scoped memory for tpu_custom_call.1']
    #allocation7 [shape = 'u8[4096]{0}', space=vmem, size = 0x1000, scoped, tag = 'output window, operand 0, single buffered']
    %14 = vsyncpa [#allocation3], 0
    %15 = vsyncpa [#allocation6], 0
    %16 = vsyncpa [#allocation4], 0
    // Predicated region
    $region2: #{tpu_custom_call.1} parent=1 // pred_check
      _
    $region3: #{tpu_custom_call.1} parent=1 // pred_check_branch
      %18 = sbr.rel (0) target = $region5
    $region4: #{tpu_custom_call.1} parent=1 // pred_region
      %s20 = ssub.s32 256, 256
      %21 = vsyncadd [#allocation3], %s20
      %s23 = sshll.u32 [#allocation2], 4
      %s24 = int_to_ptr.vmem [resolvable:$true] %s23
      %26 = dma.hbm_to_vmem [thread:$0]  %s0, 256, %s24, [#allocation3]
    $region5: #{tpu_custom_call.1} parent=1 // pred_fallthru
      _
    // Predicated region
    $region6: #{tpu_custom_call.1} parent=1 // pred_check
      _
    $region7: #{tpu_custom_call.1} parent=1 // pred_check_branch
      %28 = sbr.rel (0) target = $region9
    $region8: #{tpu_custom_call.1} parent=1 // pred_region
      %s30 = ssub.s32 2048, 2048
      %31 = vsyncadd [#allocation6], %s30
      %s32 = sshll.u32 [#allocation5], 4
      %s33 = int_to_ptr.vmem [resolvable:$true] %s32
      %38 = dma.hbm_to_vmem [thread:$0]  %s1, 2048, %s33, [#allocation6], 64, 64, 4
    $region9: #{tpu_custom_call.1} parent=1 // pred_fallthru
      _
    // Predicated region
    $region10: #{tpu_custom_call.1} parent=1 // pred_check
      _
    $region11: #{tpu_custom_call.1} parent=1 // pred_check_branch
      %40 = sbr.rel (0) target = $region13
    $region12: #{tpu_custom_call.1} parent=1 // pred_region
      _
    $region13: #{tpu_custom_call.1} parent=1 // pred_fallthru
      _
    // Predicated region
    $region14: #{tpu_custom_call.1} parent=1 // pred_check
      _
    $region15: #{tpu_custom_call.1} parent=1 // pred_check_branch
      %42 = sbr.rel (0) target = $region17
    $region16: #{tpu_custom_call.1} parent=1 // pred_region
      _
    $region17: #{tpu_custom_call.1} parent=1 // pred_fallthru
      _
    // Predicated region
    $region18: #{tpu_custom_call.1} parent=1 // pred_check
      _
    $region19: #{tpu_custom_call.1} parent=1 // pred_check_branch
      %44 = sbr.rel (0) target = $region21
    $region20: #{tpu_custom_call.1} parent=1 // pred_region
      _
    $region21: #{tpu_custom_call.1} parent=1 // pred_fallthru
      _
    // Predicated region
    $region22: #{tpu_custom_call.1} parent=1 // pred_check
      _
    $region23: #{tpu_custom_call.1} parent=1 // pred_check_branch
      %46 = sbr.rel (0) target = $region25
    $region24: #{tpu_custom_call.1} parent=1 // pred_region
      _
    $region25: #{tpu_custom_call.1} parent=1 // pred_fallthru
      _
    // Predicated region
    $region26: #{tpu_custom_call.1} parent=1 // pred_check
      _
    $region27: #{tpu_custom_call.1} parent=1 // pred_check_branch
      %48 = sbr.rel (0) target = $region29
    $region28: #{tpu_custom_call.1} parent=1 // pred_region
      _
    $region29: #{tpu_custom_call.1} parent=1 // pred_fallthru
      _
    // Predicated region
    $region30: #{tpu_custom_call.1} parent=1 // pred_check
      _
    $region31: #{tpu_custom_call.1} parent=1 // pred_check_branch
      %50 = sbr.rel (0) target = $region33
    $region32: #{tpu_custom_call.1} parent=1 // pred_region
      _
    $region33: #{tpu_custom_call.1} parent=1 // pred_fallthru
      _
    // Predicated region
    $region34: #{tpu_custom_call.1} parent=1 // pred_check
      _
    $region35: #{tpu_custom_call.1} parent=1 // pred_check_branch
      %52 = sbr.rel (0) target = $region37
    $region36: #{tpu_custom_call.1} parent=1 // pred_region
      _
    $region37: #{tpu_custom_call.1} parent=1 // pred_fallthru
      _
    // Predicated region
    $region38: #{tpu_custom_call.1} parent=1 // pred_check
      _
    $region39: #{tpu_custom_call.1} parent=1 // pred_check_branch
      %54 = sbr.rel (0) target = $region41
    $region40: #{tpu_custom_call.1} parent=1 // pred_region
      %55 = dma.done [#allocation3], 256
    $region41: #{tpu_custom_call.1} parent=1 // pred_fallthru
      _
    // Predicated region
    $region42: #{tpu_custom_call.1} parent=1 // pred_check
      _
    $region43: #{tpu_custom_call.1} parent=1 // pred_check_branch
      %57 = sbr.rel (0) target = $region45
    $region44: #{tpu_custom_call.1} parent=1 // pred_region
      %58 = dma.done [#allocation6], 2048
    $region45: #{tpu_custom_call.1} parent=1 // pred_fallthru
      _
    %v60 = vld [vmem:[#allocation2] sm:$0xff]
    %v61 = vld [vmem:[#allocation2 + $0x8] sm:$0xff]
    %v62 = vpack.c.bf16 %v60, %v60
    %v63 = vpack.c.bf16 %v61, %v61
    %v64 = vld [vmem:[#allocation5] sm:$0xf]
    %v65 = vld [vmem:[#allocation5 + $0x4] sm:$0xf]
    %v66 = vld [vmem:[#allocation5 + $0x8] sm:$0xf]
    %v67 = vld [vmem:[#allocation5 + $0xc] sm:$0xf]
    %v68 = vld [vmem:[#allocation5 + $0x10] sm:$0xf]
    %v69 = vld [vmem:[#allocation5 + $0x14] sm:$0xf]
    %v70 = vld [vmem:[#allocation5 + $0x18] sm:$0xf]
    %v71 = vld [vmem:[#allocation5 + $0x1c] sm:$0xf]
    %v72 = vld [vmem:[#allocation5 + $0x20] sm:$0xf]
    %v73 = vld [vmem:[#allocation5 + $0x24] sm:$0xf]
    %v74 = vld [vmem:[#allocation5 + $0x28] sm:$0xf]
    %v75 = vld [vmem:[#allocation5 + $0x2c] sm:$0xf]
    %v76 = vld [vmem:[#allocation5 + $0x30] sm:$0xf]
    %v77 = vld [vmem:[#allocation5 + $0x34] sm:$0xf]
    %v78 = vld [vmem:[#allocation5 + $0x38] sm:$0xf]
    %v79 = vld [vmem:[#allocation5 + $0x3c] sm:$0xf]
    %v80 = vld [vmem:[#allocation5 + $0x40] sm:$0xf]
    %v81 = vld [vmem:[#allocation5 + $0x44] sm:$0xf]
    %v82 = vld [vmem:[#allocation5 + $0x48] sm:$0xf]
    %v83 = vld [vmem:[#allocation5 + $0x4c] sm:$0xf]
    %v84 = vld [vmem:[#allocation5 + $0x50] sm:$0xf]
    %v85 = vld [vmem:[#allocation5 + $0x54] sm:$0xf]
    %v86 = vld [vmem:[#allocation5 + $0x58] sm:$0xf]
    %v87 = vld [vmem:[#allocation5 + $0x5c] sm:$0xf]
    %v88 = vld [vmem:[#allocation5 + $0x60] sm:$0xf]
    %v89 = vld [vmem:[#allocation5 + $0x64] sm:$0xf]
    %v90 = vld [vmem:[#allocation5 + $0x68] sm:$0xf]
    %v91 = vld [vmem:[#allocation5 + $0x6c] sm:$0xf]
    %v92 = vld [vmem:[#allocation5 + $0x70] sm:$0xf]
    %v93 = vld [vmem:[#allocation5 + $0x74] sm:$0xf]
    %v94 = vld [vmem:[#allocation5 + $0x78] sm:$0xf]
    %v95 = vld [vmem:[#allocation5 + $0x7c] sm:$0xf]
    %v96 = vld [vmem:[%s2] sm:$0x1]
    %v98 = vlaneseq
    %v99 = vshrl.u32 %v98, 7
    %v100 = vsub.s32 0, %v99
    %v101 = vrot.slane %v96, %v100
    %v135 = vunpack.c.l.b16 %v64
    %v136 = vunpack.c.l.b16 %v65
    %v137 = vunpack.c.l.b16 %v66
    %v138 = vunpack.c.l.b16 %v67
    %v139 = vunpack.c.l.b16 %v68
    %v140 = vunpack.c.l.b16 %v69
    %v141 = vunpack.c.l.b16 %v70
    %v142 = vunpack.c.l.b16 %v71
    %v143 = vunpack.c.l.b16 %v72
    %v144 = vunpack.c.l.b16 %v73
    %v145 = vunpack.c.l.b16 %v74
    %v146 = vunpack.c.l.b16 %v75
    %v147 = vunpack.c.l.b16 %v76
    %v148 = vunpack.c.l.b16 %v77
    %v149 = vunpack.c.l.b16 %v78
    %v150 = vunpack.c.l.b16 %v79
    %v151 = vunpack.c.l.b16 %v80
    %v152 = vunpack.c.l.b16 %v81
    %v153 = vunpack.c.l.b16 %v82
    %v154 = vunpack.c.l.b16 %v83
    %v155 = vunpack.c.l.b16 %v84
    %v156 = vunpack.c.l.b16 %v85
    %v157 = vunpack.c.l.b16 %v86
    %v158 = vunpack.c.l.b16 %v87
    %v159 = vunpack.c.l.b16 %v88
    %v160 = vunpack.c.l.b16 %v89
    %v161 = vunpack.c.l.b16 %v90
    %v162 = vunpack.c.l.b16 %v91
    %v163 = vunpack.c.l.b16 %v92
    %v164 = vunpack.c.l.b16 %v93
    %v165 = vunpack.c.l.b16 %v94
    %v166 = vunpack.c.l.b16 %v95
    %v167 = vpack.c.b16 %v136, %v135
    %v168 = vpack.c.b16 %v138, %v137
    %v169 = vpack.c.b16 %v140, %v139
    %v170 = vpack.c.b16 %v142, %v141
    %v171 = vpack.c.b16 %v144, %v143
    %v172 = vpack.c.b16 %v146, %v145
    %v173 = vpack.c.b16 %v148, %v147
    %v174 = vpack.c.b16 %v150, %v149
    %v175 = vpack.c.b16 %v152, %v151
    %v176 = vpack.c.b16 %v154, %v153
    %v177 = vpack.c.b16 %v156, %v155
    %v178 = vpack.c.b16 %v158, %v157
    %v179 = vpack.c.b16 %v160, %v159
    %v180 = vpack.c.b16 %v162, %v161
    %v181 = vpack.c.b16 %v164, %v163
    %v182 = vpack.c.b16 %v166, %v165
    %199 = vmatprep.subr.bf16.mxu0 0
    %200 = vmatpush1.bf16.msra.mxu0 %v174
    %201 = vmatprep.subr.bf16.mxu0 0
    %202 = vmatpush1.bf16.msra.mxu0 %v173
    %203 = vmatprep.subr.bf16.mxu0 0
    %204 = vmatpush1.bf16.msra.mxu0 %v172
    %205 = vmatprep.subr.bf16.mxu0 0
    %206 = vmatpush1.bf16.msra.mxu0 %v171
    %207 = vmatprep.subr.bf16.mxu0 0
    %208 = vmatpush1.bf16.msra.mxu0 %v170
    %209 = vmatprep.subr.bf16.mxu0 0
    %210 = vmatpush1.bf16.msra.mxu0 %v169
    %211 = vmatprep.subr.bf16.mxu0 0
    %212 = vmatpush1.bf16.msra.mxu0 %v168
    %213 = vmatprep.subr.bf16.mxu0 0
    %214 = vmatpush1.bf16.msra.mxu0 %v167
    %215 = vmatprep.subr.bf16.mxu0 0
    %216 = vmatpush2.bf16.msra.mxu0 %v182
    %217 = vmatprep.subr.bf16.mxu0 0
    %218 = vmatpush2.bf16.msra.mxu0 %v181
    %219 = vmatprep.subr.bf16.mxu0 0
    %220 = vmatpush2.bf16.msra.mxu0 %v180
    %221 = vmatprep.subr.bf16.mxu0 0
    %222 = vmatpush2.bf16.msra.mxu0 %v179
    %223 = vmatprep.subr.bf16.mxu0 0
    %224 = vmatpush2.bf16.msra.mxu0 %v178
    %225 = vmatprep.subr.bf16.mxu0 0
    %226 = vmatpush2.bf16.msra.mxu0 %v177
    %227 = vmatprep.subr.bf16.mxu0 0
    %228 = vmatpush2.bf16.msra.mxu0 %v176
    %229 = vmatprep.subr.bf16.mxu0 0
    %230 = vmatpush2.bf16.msra.mxu0 %v175
    %231 = vmatprep.mubr.bf16.mxu0 %v63
    %232 = vmatmul.mubr.bf16.gmra.mxu0 %v62
    %v233 = vpop.f32.mrf.mxu0
    %v234 = vadd.f32 %v101, %v233
    %v235 = vpop.f32.mrf.mxu0
    %v236 = vpop.f32.mrf.mxu0
    %v237 = vpop.f32.mrf.mxu0
    %238 = vdwg.mxu0
    %v239 = vmax.f32 %v234, 0.0
    %v240 = vpack.c.bf16 %v239, %v239
    %v241 = vld [vmem:[%s3] sm:$0xf]
    %v242 = vld [vmem:[%s3 + $0x4] sm:$0xf]
    %v243 = vld [vmem:[%s3 + $0x8] sm:$0xf]
    %v244 = vld [vmem:[%s3 + $0xc] sm:$0xf]
    %v245 = vld [vmem:[%s3 + $0x10] sm:$0xf]
    %v246 = vld [vmem:[%s3 + $0x14] sm:$0xf]
    %v247 = vld [vmem:[%s3 + $0x18] sm:$0xf]
    %v248 = vld [vmem:[%s3 + $0x1c] sm:$0xf]
    %v249 = vld [vmem:[%s3 + $0x20] sm:$0xf]
    %v250 = vld [vmem:[%s3 + $0x24] sm:$0xf]
    %v251 = vld [vmem:[%s3 + $0x28] sm:$0xf]
    %v252 = vld [vmem:[%s3 + $0x2c] sm:$0xf]
    %v253 = vld [vmem:[%s3 + $0x30] sm:$0xf]
    %v254 = vld [vmem:[%s3 + $0x34] sm:$0xf]
    %v255 = vld [vmem:[%s3 + $0x38] sm:$0xf]
    %v256 = vld [vmem:[%s3 + $0x3c] sm:$0xf]
    %v257 = vld [vmem:[%s4] sm:$0x1]
    %v259 = vlaneseq
    %v260 = vshrl.u32 %v259, 7
    %v261 = vsub.s32 0, %v260
    %v262 = vrot.slane %v257, %v261
    %v280 = vunpack.c.l.b16 %v241
    %v281 = vunpack.c.l.b16 %v242
    %v282 = vunpack.c.l.b16 %v243
    %v283 = vunpack.c.l.b16 %v244
    %v284 = vunpack.c.l.b16 %v245
    %v285 = vunpack.c.l.b16 %v246
    %v286 = vunpack.c.l.b16 %v247
    %v287 = vunpack.c.l.b16 %v248
    %v288 = vunpack.c.l.b16 %v249
    %v289 = vunpack.c.l.b16 %v250
    %v290 = vunpack.c.l.b16 %v251
    %v291 = vunpack.c.l.b16 %v252
    %v292 = vunpack.c.l.b16 %v253
    %v293 = vunpack.c.l.b16 %v254
    %v294 = vunpack.c.l.b16 %v255
    %v295 = vunpack.c.l.b16 %v256
    %v296 = vpack.c.b16 %v281, %v280
    %v297 = vpack.c.b16 %v283, %v282
    %v298 = vpack.c.b16 %v285, %v284
    %v299 = vpack.c.b16 %v287, %v286
    %v300 = vpack.c.b16 %v289, %v288
    %v301 = vpack.c.b16 %v291, %v290
    %v302 = vpack.c.b16 %v293, %v292
    %v303 = vpack.c.b16 %v295, %v294
    %312 = vmatprep.subr.bf16.mxu0 0
    %313 = vmatpush1.bf16.msra.mxu0 %v303
    %314 = vmatprep.subr.bf16.mxu0 0
    %315 = vmatpush1.bf16.msra.mxu0 %v302
    %316 = vmatprep.subr.bf16.mxu0 0
    %317 = vmatpush1.bf16.msra.mxu0 %v301
    %318 = vmatprep.subr.bf16.mxu0 0
    %319 = vmatpush1.bf16.msra.mxu0 %v300
    %320 = vmatprep.subr.bf16.mxu0 0
    %321 = vmatpush1.bf16.msra.mxu0 %v299
    %322 = vmatprep.subr.bf16.mxu0 0
    %323 = vmatpush1.bf16.msra.mxu0 %v298
    %324 = vmatprep.subr.bf16.mxu0 0
    %325 = vmatpush1.bf16.msra.mxu0 %v297
    %326 = vmatprep.subr.bf16.mxu0 0
    %327 = vmatpush1.bf16.msra.mxu0 %v296
    %328 = vmatprep.subr.bf16.mxu0 0
    %329 = vmatpush2.bf16.msra.mxu0 0
    %330 = vmatprep.subr.bf16.mxu0 0
    %331 = vmatpush2.bf16.msra.mxu0 0
    %332 = vmatprep.subr.bf16.mxu0 0
    %333 = vmatpush2.bf16.msra.mxu0 0
    %334 = vmatprep.subr.bf16.mxu0 0
    %335 = vmatpush2.bf16.msra.mxu0 0
    %336 = vmatprep.subr.bf16.mxu0 0
    %337 = vmatpush2.bf16.msra.mxu0 0
    %338 = vmatprep.subr.bf16.mxu0 0
    %339 = vmatpush2.bf16.msra.mxu0 0
    %340 = vmatprep.subr.bf16.mxu0 0
    %341 = vmatpush2.bf16.msra.mxu0 0
    %342 = vmatprep.subr.bf16.mxu0 0
    %343 = vmatpush2.bf16.msra.mxu0 0
    %344 = vmatprep.mubr.bf16.mxu0 0
    %345 = vmatmul.mubr.bf16.gmra.mxu0 %v240
    %v346 = vpop.f32.mrf.mxu0
    %v347 = vadd.f32 %v262, %v346
    %v348 = vpop.f32.mrf.mxu0
    %v349 = vpop.f32.mrf.mxu0
    %v350 = vpop.f32.mrf.mxu0
    %351 = vdwg.mxu0
    %352 = vadd.xlane.f32.xlu0 %v347
    %v353 = vpop.xlane.xlu0 %352
    %v354 = vmul.f32 %v353, 0.03125
    %v355 = vsub.f32 %v347, %v354
    %v356 = vlaneseq
    %v357 = vand.u32 %v356, 127
    %vm358 = vcmp.lt.s32.totalorder %v357, 32
    %v359 = vsel %vm358, 1, 0
    %vm360 = vcmp.eq.s32.totalorder %v359, 1
    %v361 = vsel %vm360, %v355, 0.0
    %v362 = vmul.f32 %v361, %v361
    %363 = vadd.xlane.f32.xlu0 %v362
    %v364 = vpop.xlane.xlu0 %363
    %v365 = vmul.f32 %v364, 0.03125
    %v366 = vadd.f32 %v365, 1e-05
    %v367 = vrsqrt.pop %v366
    %v368 = vmul.f32 %v361, %v367
    %v369 = vld [vmem:[%s5] sm:$0x1]
    %v371 = vlaneseq
    %v372 = vshrl.u32 %v371, 7
    %v373 = vsub.s32 0, %v372
    %v374 = vrot.slane %v369, %v373
    %v376 = vmul.f32 %v368, %v374
    %v377 = vld [vmem:[%s6] sm:$0x1]
    %v379 = vlaneseq
    %v380 = vshrl.u32 %v379, 7
    %v381 = vsub.s32 0, %v380
    %v382 = vrot.slane %v377, %v381
    %v384 = vadd.f32 %v376, %v382
    %v385 = vmax.f32 %v384, 0.0
    %v386 = vpack.c.bf16 %v385, %v385
    %v387 = vld [vmem:[%s7] sm:$0xf]
    %v388 = vld [vmem:[%s7 + $0x4] sm:$0xf]
    %v389 = vld [vmem:[%s7 + $0x8] sm:$0xf]
    %v390 = vld [vmem:[%s7 + $0xc] sm:$0xf]
    %v391 = vld [vmem:[%s7 + $0x10] sm:$0xf]
    %v392 = vld [vmem:[%s7 + $0x14] sm:$0xf]
    %v393 = vld [vmem:[%s7 + $0x18] sm:$0xf]
    %v394 = vld [vmem:[%s7 + $0x1c] sm:$0xf]
    %v395 = vld [vmem:[%s7 + $0x20] sm:$0xf]
    %v396 = vld [vmem:[%s7 + $0x24] sm:$0xf]
    %v397 = vld [vmem:[%s7 + $0x28] sm:$0xf]
    %v398 = vld [vmem:[%s7 + $0x2c] sm:$0xf]
    %v399 = vld [vmem:[%s7 + $0x30] sm:$0xf]
    %v400 = vld [vmem:[%s7 + $0x34] sm:$0xf]
    %v401 = vld [vmem:[%s7 + $0x38] sm:$0xf]
    %v402 = vld [vmem:[%s7 + $0x3c] sm:$0xf]
    %v403 = vld [vmem:[%s8] sm:$0x1]
    %v405 = vlaneseq
    %v406 = vshrl.u32 %v405, 7
    %v407 = vsub.s32 0, %v406
    %v408 = vrot.slane %v403, %v407
    %v426 = vunpack.c.l.b16 %v387
    %v427 = vunpack.c.l.b16 %v388
    %v428 = vunpack.c.l.b16 %v389
    %v429 = vunpack.c.l.b16 %v390
    %v430 = vunpack.c.l.b16 %v391
    %v431 = vunpack.c.l.b16 %v392
    %v432 = vunpack.c.l.b16 %v393
    %v433 = vunpack.c.l.b16 %v394
    %v434 = vunpack.c.l.b16 %v395
    %v435 = vunpack.c.l.b16 %v396
    %v436 = vunpack.c.l.b16 %v397
    %v437 = vunpack.c.l.b16 %v398
    %v438 = vunpack.c.l.b16 %v399
    %v439 = vunpack.c.l.b16 %v400
    %v440 = vunpack.c.l.b16 %v401
    %v441 = vunpack.c.l.b16 %v402
    %v442 = vpack.c.b16 %v427, %v426
    %v443 = vpack.c.b16 %v429, %v428
    %v444 = vpack.c.b16 %v431, %v430
    %v445 = vpack.c.b16 %v433, %v432
    %v446 = vpack.c.b16 %v435, %v434
    %v447 = vpack.c.b16 %v437, %v436
    %v448 = vpack.c.b16 %v439, %v438
    %v449 = vpack.c.b16 %v441, %v440
    %458 = vmatprep.subr.bf16.mxu0 0
    %459 = vmatpush1.bf16.msra.mxu0 %v449
    %460 = vmatprep.subr.bf16.mxu0 0
    %461 = vmatpush1.bf16.msra.mxu0 %v448
    %462 = vmatprep.subr.bf16.mxu0 0
    %463 = vmatpush1.bf16.msra.mxu0 %v447
    %464 = vmatprep.subr.bf16.mxu0 0
    %465 = vmatpush1.bf16.msra.mxu0 %v446
    %466 = vmatprep.subr.bf16.mxu0 0
    %467 = vmatpush1.bf16.msra.mxu0 %v445
    %468 = vmatprep.subr.bf16.mxu0 0
    %469 = vmatpush1.bf16.msra.mxu0 %v444
    %470 = vmatprep.subr.bf16.mxu0 0
    %471 = vmatpush1.bf16.msra.mxu0 %v443
    %472 = vmatprep.subr.bf16.mxu0 0
    %473 = vmatpush1.bf16.msra.mxu0 %v442
    %474 = vmatprep.subr.bf16.mxu0 0
    %475 = vmatpush2.bf16.msra.mxu0 0
    %476 = vmatprep.subr.bf16.mxu0 0
    %477 = vmatpush2.bf16.msra.mxu0 0
    %478 = vmatprep.subr.bf16.mxu0 0
    %479 = vmatpush2.bf16.msra.mxu0 0
    %480 = vmatprep.subr.bf16.mxu0 0
    %481 = vmatpush2.bf16.msra.mxu0 0
    %482 = vmatprep.subr.bf16.mxu0 0
    %483 = vmatpush2.bf16.msra.mxu0 0
    %484 = vmatprep.subr.bf16.mxu0 0
    %485 = vmatpush2.bf16.msra.mxu0 0
    %486 = vmatprep.subr.bf16.mxu0 0
    %487 = vmatpush2.bf16.msra.mxu0 0
    %488 = vmatprep.subr.bf16.mxu0 0
    %489 = vmatpush2.bf16.msra.mxu0 0
    %490 = vmatprep.mubr.bf16.mxu0 0
    %491 = vmatmul.mubr.bf16.gmra.mxu0 %v386
    %v492 = vpop.f32.mrf.mxu0
    %v493 = vadd.f32 %v408, %v492
    %v494 = vpop.f32.mrf.mxu0
    %v495 = vpop.f32.mrf.mxu0
    %v496 = vpop.f32.mrf.mxu0
    %497 = vdwg.mxu0
    %vm498 = vcmask 64512
    %499 = vst.msk [vmem:[#allocation7] sm:$0xff] %vm498, %v493
    // Predicated region
    $region46: #{tpu_custom_call.1} parent=1 // pred_check
      _
    $region47: #{tpu_custom_call.1} parent=1 // pred_check_branch
      %501 = sbr.rel (0) target = $region49
    $region48: #{tpu_custom_call.1} parent=1 // pred_region
      %s503 = ssub.s32 128, 128
      %504 = vsyncadd [#allocation4], %s503
      %s506 = sshll.u32 [#allocation7], 4
      %s507 = int_to_ptr.vmem [resolvable:$true] %s506
      %509 = dma.vmem_to_hbm [thread:$0]  %s507, 128, %s9, [#allocation4]
    $region49: #{tpu_custom_call.1} parent=1 // pred_fallthru
      _
    // Predicated region
    $region50: #{tpu_custom_call.1} parent=1 // pred_check
      _
    $region51: #{tpu_custom_call.1} parent=1 // pred_check_branch
      %511 = sbr.rel (0) target = $region53
    $region52: #{tpu_custom_call.1} parent=1 // pred_region
      %512 = dma.done [#allocation4], 128
    $region53: #{tpu_custom_call.1} parent=1 // pred_fallthru
      _
    %513 = vsyncpa [#allocation3], 1
    %514 = vsyncpa [#allocation6], 1
    %515 = vsyncpa [#allocation4], 1

</llo_original>
